<compile_context>
chip_gen: v6e
topology: v6e:2x2x1
jax: 0.10.0
libtpu: 0.0.40
codegen_flags: <defaults>
</compile_context>

<pallas_src>
import functools
import math

import jax
import jax.numpy as jnp
from jax.experimental import pallas as pl
from jax.experimental.pallas import tpu as pltpu


def _focal_loss_kernel(pred_ref, target_ref, partial_ref, *,
                       alpha, gamma, m_rows, block_rows, lane, needs_mask):
    x = pred_ref[...].astype(jnp.float32)        # logits, (block_rows, lane)
    t = target_ref[...].astype(jnp.float32)      # binary mask, (block_rows, lane)

    p = jax.nn.sigmoid(x)                        # torch.sigmoid(pred)
    is_pos = t == 1.0
    one_m_p = 1.0 - p
    pt = jnp.where(is_pos, p, one_m_p)           # torch.where(t == 1, p, 1 - p)
    one_minus_pt = jnp.where(is_pos, one_m_p, p)  # == 1 - pt without an extra sub chain

    # (1 - pt) ** gamma -- special-case small integer gammas to stay off the EUP.
    if gamma == 2.0:
        pow_term = one_minus_pt * one_minus_pt
    elif gamma == 1.0:
        pow_term = one_minus_pt
    elif gamma == 0.0:
        pow_term = jnp.ones_like(one_minus_pt)
    else:
        pow_term = jnp.power(one_minus_pt, jnp.float32(gamma))

    alpha_factor = jnp.where(is_pos, jnp.float32(alpha), jnp.float32(1.0 - alpha))
    focal_weight = alpha_factor * pow_term

    # Binary-target BCE: for t in {0,1}, F.binary_cross_entropy(p, t) reduces to
    # -clamp(log(pt), -100)  (PyTorch clamps log at -100).  Using log(pt) (already
    # needed) gives exactly one log/elem and matches PyTorch in both saturation
    # regions (pt == 0 -> log -> -inf -> clamp -> bce = 100).
    neg_bce = jnp.maximum(jnp.log(pt), -100.0)   # == -bce, <= 0
    neg_focal = focal_weight * neg_bce           # == -focal; negated in the epilogue

    def _reduce_store(vals):
        # Partial-reduce (block_rows, lane) -> (8, lane) with plain VPU adds; the
        # cross-lane reduction happens once, outside the kernel.
        partial_ref[...] = vals.reshape(block_rows // 8, 8, lane).sum(axis=0)

    if needs_mask:
        # Only the ragged last grid block contains out-of-bounds (garbage) rows:
        # gate the iota/compare/select mask to that single step.
        last = pl.num_programs(0) - 1
        j = pl.program_id(0)

        @pl.when(j != last)
        def _():
            _reduce_store(neg_focal)

        @pl.when(j == last)
        def _():
            base_row = (pl.num_programs(0) - 1) * block_rows
            row = base_row + jax.lax.broadcasted_iota(jnp.int32, (block_rows, lane), 0)
            _reduce_store(jnp.where(row < m_rows, neg_focal, 0.0))
    else:
        _reduce_store(neg_focal)


def _focal_elems_jax(pred, target, alpha, gamma):
    """Per-element focal loss (PyTorch semantics, binary target) in plain JAX."""
    p = jax.nn.sigmoid(pred.astype(jnp.float32))
    t = target.astype(jnp.float32)
    is_pos = t == 1.0
    pt = jnp.where(is_pos, p, 1.0 - p)
    af = jnp.where(is_pos, jnp.float32(alpha), jnp.float32(1.0 - alpha))
    fw = af * jnp.power(1.0 - pt, jnp.float32(gamma))
    bce = -jnp.maximum(jnp.log(pt), -100.0)
    return fw * bce


def focal_loss(pred, target, *, alpha=0.25, gamma=2.0, eps=1e-7,
               block_rows=8192, lane=128):
    """pred, target: [B, 1, H, W]. Returns scalar focal loss (f32).

    Notes:
      * `eps` is accepted only for signature parity with the PyTorch module (unused
        there as well).
      * target is assumed binary {0, 1} (segmentation mask), matching the PyTorch
        module's `target == 1` branching.
      * Pass bf16 pred / int8-or-bf16 target from the producer to cut HBM traffic;
        the kernel casts to f32 internally.
    """
    # TODO(synk): F.interpolate(target, mode='nearest') when shapes differ is not
    # implemented; we assume pred.shape == target.shape as in the common path.
    assert pred.shape == target.shape, "shape-mismatch interpolate path not implemented"

    total = math.prod(pred.shape)                # B * C * H * W valid elements
    pred_flat = pred.reshape(-1)
    target_flat = target.reshape(-1)

    chunk = 8 * lane                             # 1024: (8,128) f32 tile granularity
    aligned = (total // chunk) * chunk
    tail = total - aligned                       # 0 <= tail < 1024

    # Tail (and truly tiny inputs): a few lines of plain JAX instead of a full-copy pad.
    tail_sum = jnp.float32(0.0)
    if tail:
        tail_sum = jnp.sum(_focal_elems_jax(pred_flat[aligned:], target_flat[aligned:],
                                            alpha, gamma))
    if aligned == 0:                             # total < 1024: kernel not worth launching
        return tail_sum / jnp.float32(total)

    if tail:                                     # uncommon: slice the aligned prefix
        pred_flat = pred_flat[:aligned]
        target_flat = target_flat[:aligned]
    m_rows = aligned // lane                     # multiple of 8, >= 8
    pred2 = pred_flat.reshape(m_rows, lane)      # lane-dense slab, zero-copy reshape
    target2 = target_flat.reshape(m_rows, lane)

    # Block-row selection: as large as possible, multiple of 32 (int8-friendly), and
    # capped so 2 inputs x 2 buffers stays well inside v7x's per-TC VMEM.
    per_row_dbuf_bytes = 2 * lane * (pred2.dtype.itemsize + target2.dtype.itemsize)
    br_cap = max(32, (((24 << 20) // per_row_dbuf_bytes) // 32) * 32)
    br = min(int(block_rows), m_rows, br_cap)
    br = (br // 32) * 32 if br >= 32 else (br // 8) * 8   # m_rows is a multiple of 8
    nb = pl.cdiv(m_rows, br)
    needs_mask = (nb * br) != m_rows             # ragged last grid block only

    kernel = functools.partial(
        _focal_loss_kernel,
        alpha=float(alpha), gamma=float(gamma),
        m_rows=m_rows, block_rows=br, lane=lane, needs_mask=needs_mask,
    )

    in_bytes = (pred2.size * pred2.dtype.itemsize
                + target2.size * target2.dtype.itemsize)
    out_bytes = nb * 8 * lane * 4
    cost = pl.CostEstimate(
        flops=10 * aligned,
        transcendentals=2 * aligned,             # sigmoid + log
        bytes_accessed=in_bytes + out_bytes,
    )

    in_block_bytes = 2 * br * lane * (pred2.dtype.itemsize + target2.dtype.itemsize)
    vmem_limit = int(min(max(in_block_bytes + (16 << 20), 32 << 20), 64 << 20))

    partials = pl.pallas_call(
        kernel,
        out_shape=jax.ShapeDtypeStruct((nb * 8, lane), jnp.float32),
        grid_spec=pltpu.PrefetchScalarGridSpec(
            num_scalar_prefetch=0,
            grid=(nb,),
            in_specs=[
                pl.BlockSpec((br, lane), lambda j: (j, 0)),
                pl.BlockSpec((br, lane), lambda j: (j, 0)),
            ],
            out_specs=pl.BlockSpec((8, lane), lambda j: (j, 0)),
        ),
        compiler_params=pltpu.CompilerParams(
            dimension_semantics=("parallel",),    # per-step partials -> 2-TC split on v7x
            vmem_limit_bytes=vmem_limit,
        ),
        cost_estimate=cost,
    )(pred2, target2)

    # Kernel accumulated -focal; negate here (one scalar op) and fold in the JAX tail.
    return (tail_sum - jnp.sum(partials)) / jnp.float32(total)


def _focal_loss_ref(pred, target, alpha=0.25, gamma=2.0):
    """Pure-JAX mirror of the PyTorch forward (sigmoid -> focal weight -> BCE -> mean)."""
    B = pred.shape[0]
    p = jax.nn.sigmoid(pred.astype(jnp.float32)).reshape(B, -1)
    t = target.astype(jnp.float32).reshape(B, -1)
    pt = jnp.where(t == 1.0, p, 1.0 - p)
    af = jnp.where(t == 1.0, alpha, 1.0 - alpha)
    fw = af * jnp.power(1.0 - pt, gamma)
    bce = -(t * jnp.maximum(jnp.log(p), -100.0)
            + (1.0 - t) * jnp.maximum(jnp.log(1.0 - p), -100.0))
    return jnp.mean(fw * bce)


if __name__ == "__main__":
    key = jax.random.PRNGKey(0)
    k1, k2, k3, k4 = jax.random.split(key, 4)

    # Test 1: aligned shape (common path: no slice, no pad, no mask).
    B, C, H, W = 2, 1, 64, 64
    pred = jax.random.normal(k1, (B, C, H, W), dtype=jnp.float32) * 2.0
    target = jax.random.bernoulli(k2, 0.3, (B, C, H, W)).astype(jnp.float32)
    loss = jax.block_until_ready(focal_loss(pred, target))
    ref = _focal_loss_ref(pred, target)
    assert jnp.allclose(loss, ref, rtol=1e-4, atol=1e-6), (loss, ref)

    # Test 2: unaligned shape + larger logits (ragged last block + pl.when mask,
    # plain-JAX tail, and sigmoid-saturation region).
    B2, C2, H2, W2 = 2, 1, 63, 65
    pred_u = jax.random.normal(k3, (B2, C2, H2, W2), dtype=jnp.float32) * 8.0
    target_u = jax.random.bernoulli(k4, 0.3, (B2, C2, H2, W2)).astype(jnp.float32)
    loss_u = jax.block_until_ready(focal_loss(pred_u, target_u))
    ref_u = _focal_loss_ref(pred_u, target_u)
    assert jnp.allclose(loss_u, ref_u, rtol=1e-4, atol=1e-6), (loss_u, ref_u)

    print("KERNEL_OK")
</pallas_src>

<mosaic_0001>
module attributes {stable_mosaic.version = 11 : i64} {
  func.func @_focal_loss_kernel(%arg0: i32, %arg1: memref<64x128xf32, #tpu.memory_space<vmem>>, %arg2: memref<64x128xf32, #tpu.memory_space<vmem>>, %arg3: memref<8x128xf32, #tpu.memory_space<vmem>>) attributes {dimension_semantics = [#tpu.dimension_semantics<parallel>], iteration_bounds = array<i64: 1>, scalar_prefetch = 0 : i64, scratch_operands = 0 : i64, tpu.core_type = #tpu.core_type<tc>, window_params = [{transform_indices = @transform_0, window_bounds = array<i64: 64, 128>}, {transform_indices = @transform_1, window_bounds = array<i64: 64, 128>}, {transform_indices = @transform_2, window_bounds = array<i64: 8, 128>}]} {
    %c0 = arith.constant 0 : index
    %c0_0 = arith.constant 0 : index
    %0 = vector.load %arg1[%c0, %c0_0] : memref<64x128xf32, #tpu.memory_space<vmem>>, vector<64x128xf32>
    %c0_1 = arith.constant 0 : index
    %c0_2 = arith.constant 0 : index
    %1 = vector.load %arg2[%c0_1, %c0_2] : memref<64x128xf32, #tpu.memory_space<vmem>>, vector<64x128xf32>
    %2 = arith.negf %0 : vector<64x128xf32>
    %3 = math.exp %2 : vector<64x128xf32>
    %cst = arith.constant 1.000000e+00 : f32
    %4 = vector.broadcast %cst : f32 to vector<64x128xf32>
    %5 = arith.addf %4, %3 : vector<64x128xf32>
    %6 = arith.divf %4, %5 : vector<64x128xf32>
    %cst_3 = arith.constant 1.000000e+00 : f32
    %7 = vector.broadcast %cst_3 : f32 to vector<64x128xf32>
    %8 = arith.cmpf oeq, %1, %7 : vector<64x128xf32>
    %cst_4 = arith.constant 1.000000e+00 : f32
    %9 = vector.broadcast %cst_4 : f32 to vector<64x128xf32>
    %10 = arith.subf %9, %6 : vector<64x128xf32>
    %11 = arith.select %8, %6, %10 : vector<64x128xi1>, vector<64x128xf32>
    %12 = arith.select %8, %10, %6 : vector<64x128xi1>, vector<64x128xf32>
    %13 = arith.mulf %12, %12 : vector<64x128xf32>
    %cst_5 = arith.constant 2.500000e-01 : f32
    %cst_6 = arith.constant 7.500000e-01 : f32
    %14 = vector.broadcast %cst_5 : f32 to vector<64x128xf32>
    %15 = vector.broadcast %cst_6 : f32 to vector<64x128xf32>
    %16 = arith.select %8, %14, %15 : vector<64x128xi1>, vector<64x128xf32>
    %17 = arith.mulf %16, %13 : vector<64x128xf32>
    %18 = math.log %11 : vector<64x128xf32>
    %cst_7 = arith.constant -1.000000e+02 : f32
    %19 = vector.broadcast %cst_7 : f32 to vector<64x128xf32>
    %20 = arith.maximumf %18, %19 : vector<64x128xf32>
    %21 = arith.mulf %17, %20 : vector<64x128xf32>
    %22 = vector.shape_cast %21 : vector<64x128xf32> to vector<8x8x128xf32>
    %cst_8 = arith.constant dense<0.000000e+00> : vector<8x128xf32>
    %23 = vector.multi_reduction <add>, %22, %cst_8 [0] : vector<8x8x128xf32> to vector<8x128xf32>
    %c0_9 = arith.constant 0 : index
    %c0_10 = arith.constant 0 : index
    %24 = vector.load %arg3[%c0_9, %c0_10] : memref<8x128xf32, #tpu.memory_space<vmem>>, vector<8x128xf32>
    tpu.vector_store %arg3[%c0_9, %c0_10], %23 {strides = array<i32>} : memref<8x128xf32, #tpu.memory_space<vmem>>, vector<8x128xf32>,
    return
  }
  func.func @transform_0(%arg0: i32) -> (i32, i32) {
    %c0_i32 = arith.constant 0 : i32
    %c0_i32_0 = arith.constant 0 : i32
    return %arg0, %c0_i32 : i32, i32
  }
  func.func @transform_1(%arg0: i32) -> (i32, i32) {
    %c0_i32 = arith.constant 0 : i32
    %c0_i32_0 = arith.constant 0 : i32
    return %arg0, %c0_i32 : i32, i32
  }
  func.func @transform_2(%arg0: i32) -> (i32, i32) {
    %c0_i32 = arith.constant 0 : i32
    %c0_i32_0 = arith.constant 0 : i32
    return %arg0, %c0_i32 : i32, i32
  }
}

</mosaic_0001>

<llo_original>
// kernel: tpu_custom_call.1
$region0: #{tpu_custom_call.1}
  #allocation0 [shape = 'u32[]', space=smem, size = 0x4, offset = 0x4, fixed_abs, tag = 'smem constant byte address 0x4 - core index']
  #allocation1 [shape = 'u32[144,128]{1,0:T(1,128)}', space=vmem, size = 0x12000, scoped, tag = 'internal scratch']
  %s0 = inlined_call_operand.hbm [shape: f32[64,128], index: 0, kind: input, shape index: {}]
  %s1 = inlined_call_operand.hbm [shape: f32[64,128], index: 1, kind: input, shape index: {}]
  %s2 = inlined_call_operand.hbm [shape: f32[8,128], index: 2, kind: output, shape index: {}]
  %s3 = sld [smem:[#allocation0]]
  $region26: #{tpu_custom_call.1} parent=0
    _
  %s5 = ssub.s32 1, %s3
  %s6 = scalar_select 0, %s5, %s3
  $region1: #{tpu_custom_call.1} parent=0
    #allocation2 [shape = 'u8[32768]{0}', space=vmem, size = 0x8000, scoped, tag = 'input window, operand 0, single buffered']
    #allocation3 [shape = 's32[1]{0}', space=sflag, size = 0x4, scoped, tag = 'scoped memory for tpu_custom_call.1']
    #allocation4 [shape = 's32[1]{0}', space=sflag, size = 0x4, scoped, tag = 'scoped memory for tpu_custom_call.1']
    #allocation5 [shape = 'u8[32768]{0}', space=vmem, size = 0x8000, scoped, tag = 'input window, operand 1, single buffered']
    #allocation6 [shape = 's32[1]{0}', space=sflag, size = 0x4, scoped, tag = 'scoped memory for tpu_custom_call.1']
    #allocation7 [shape = 'u8[4096]{0}', space=vmem, size = 0x1000, scoped, tag = 'output window, operand 0, single buffered']
    %7 = vsyncpa [#allocation3], 0
    %8 = vsyncpa [#allocation6], 0
    %9 = vsyncpa [#allocation4], 0
    // Predicated region
    $region2: #{tpu_custom_call.1} parent=1 // pred_check
      _
    $region3: #{tpu_custom_call.1} parent=1 // pred_check_branch
      %11 = sbr.rel (0) target = $region5
    $region4: #{tpu_custom_call.1} parent=1 // pred_region
      %s13 = ssub.s32 1024, 1024
      %14 = vsyncadd [#allocation3], %s13
      %s15 = sshll.u32 [#allocation2], 4
      %s16 = int_to_ptr.vmem [resolvable:$true] %s15
      %21 = dma.hbm_to_vmem [thread:$0]  %s0, 1024, %s16, [#allocation3], 128, 128, 8
    $region5: #{tpu_custom_call.1} parent=1 // pred_fallthru
      _
    // Predicated region
    $region6: #{tpu_custom_call.1} parent=1 // pred_check
      _
    $region7: #{tpu_custom_call.1} parent=1 // pred_check_branch
      %23 = sbr.rel (0) target = $region9
    $region8: #{tpu_custom_call.1} parent=1 // pred_region
      %s25 = ssub.s32 1024, 1024
      %26 = vsyncadd [#allocation6], %s25
      %s27 = sshll.u32 [#allocation5], 4
      %s28 = int_to_ptr.vmem [resolvable:$true] %s27
      %33 = dma.hbm_to_vmem [thread:$0]  %s1, 1024, %s28, [#allocation6], 128, 128, 8
    $region9: #{tpu_custom_call.1} parent=1 // pred_fallthru
      _
    // Predicated region
    $region10: #{tpu_custom_call.1} parent=1 // pred_check
      _
    $region11: #{tpu_custom_call.1} parent=1 // pred_check_branch
      %35 = sbr.rel (0) target = $region13
    $region12: #{tpu_custom_call.1} parent=1 // pred_region
      %36 = dma.done [#allocation3], 1024
    $region13: #{tpu_custom_call.1} parent=1 // pred_fallthru
      _
    // Predicated region
    $region14: #{tpu_custom_call.1} parent=1 // pred_check
      _
    $region15: #{tpu_custom_call.1} parent=1 // pred_check_branch
      %38 = sbr.rel (0) target = $region17
    $region16: #{tpu_custom_call.1} parent=1 // pred_region
      %39 = dma.done [#allocation6], 1024
    $region17: #{tpu_custom_call.1} parent=1 // pred_fallthru
      _
    %v40 = vld [vmem:[#allocation2] sm:$0xff]
    %v41 = vld [vmem:[#allocation2 + $0x8] sm:$0xff]
    %v42 = vld [vmem:[#allocation2 + $0x10] sm:$0xff]
    %v43 = vld [vmem:[#allocation2 + $0x18] sm:$0xff]
    %v44 = vld [vmem:[#allocation2 + $0x20] sm:$0xff]
    %v45 = vld [vmem:[#allocation2 + $0x28] sm:$0xff]
    %v46 = vld [vmem:[#allocation2 + $0x30] sm:$0xff]
    %v47 = vld [vmem:[#allocation2 + $0x38] sm:$0xff]
    %v48 = vld [vmem:[#allocation5] sm:$0xff]
    %v49 = vld [vmem:[#allocation5 + $0x8] sm:$0xff]
    %v50 = vld [vmem:[#allocation5 + $0x10] sm:$0xff]
    %v51 = vld [vmem:[#allocation5 + $0x18] sm:$0xff]
    %v52 = vld [vmem:[#allocation5 + $0x20] sm:$0xff]
    %v53 = vld [vmem:[#allocation5 + $0x28] sm:$0xff]
    %v54 = vld [vmem:[#allocation5 + $0x30] sm:$0xff]
    %v55 = vld [vmem:[#allocation5 + $0x38] sm:$0xff]
    %v56 = vxor.u32 %v40, 2147483648
    %v57 = vxor.u32 %v41, 2147483648
    %v58 = vxor.u32 %v42, 2147483648
    %v59 = vxor.u32 %v43, 2147483648
    %v60 = vxor.u32 %v44, 2147483648
    %v61 = vxor.u32 %v45, 2147483648
    %v62 = vxor.u32 %v46, 2147483648
    %v63 = vxor.u32 %v47, 2147483648
    %v64 = vmul.f32 %v56, 1.442695
    %v65 = vpow.pop %v64
    %v66 = vmul.f32 %v57, 1.442695
    %v67 = vpow.pop %v66
    %v68 = vmul.f32 %v58, 1.442695
    %v69 = vpow.pop %v68
    %v70 = vmul.f32 %v59, 1.442695
    %v71 = vpow.pop %v70
    %v72 = vmul.f32 %v60, 1.442695
    %v73 = vpow.pop %v72
    %v74 = vmul.f32 %v61, 1.442695
    %v75 = vpow.pop %v74
    %v76 = vmul.f32 %v62, 1.442695
    %v77 = vpow.pop %v76
    %v78 = vmul.f32 %v63, 1.442695
    %v79 = vpow.pop %v78
    %v80 = vadd.f32 %v65, 1.0
    %v81 = vadd.f32 %v67, 1.0
    %v82 = vadd.f32 %v69, 1.0
    %v83 = vadd.f32 %v71, 1.0
    %v84 = vadd.f32 %v73, 1.0
    %v85 = vadd.f32 %v75, 1.0
    %v86 = vadd.f32 %v77, 1.0
    %v87 = vadd.f32 %v79, 1.0
    %v88 = vrcp.pop %v80
    %v89 = vmul.f32 1.0, %v88
    %v90 = vrcp.pop %v81
    %v91 = vmul.f32 1.0, %v90
    %v92 = vrcp.pop %v82
    %v93 = vmul.f32 1.0, %v92
    %v94 = vrcp.pop %v83
    %v95 = vmul.f32 1.0, %v94
    %v96 = vrcp.pop %v84
    %v97 = vmul.f32 1.0, %v96
    %v98 = vrcp.pop %v85
    %v99 = vmul.f32 1.0, %v98
    %v100 = vrcp.pop %v86
    %v101 = vmul.f32 1.0, %v100
    %v102 = vrcp.pop %v87
    %v103 = vmul.f32 1.0, %v102
    %vm104 = vcmp.eq.f32.partialorder %v48, 1.0
    %vm105 = vcmp.eq.f32.partialorder %v49, 1.0
    %vm106 = vcmp.eq.f32.partialorder %v50, 1.0
    %vm107 = vcmp.eq.f32.partialorder %v51, 1.0
    %vm108 = vcmp.eq.f32.partialorder %v52, 1.0
    %vm109 = vcmp.eq.f32.partialorder %v53, 1.0
    %vm110 = vcmp.eq.f32.partialorder %v54, 1.0
    %vm111 = vcmp.eq.f32.partialorder %v55, 1.0
    %v112 = vsub.f32 1.0, %v89
    %v113 = vsub.f32 1.0, %v91
    %v114 = vsub.f32 1.0, %v93
    %v115 = vsub.f32 1.0, %v95
    %v116 = vsub.f32 1.0, %v97
    %v117 = vsub.f32 1.0, %v99
    %v118 = vsub.f32 1.0, %v101
    %v119 = vsub.f32 1.0, %v103
    %v120 = vsel %vm104, %v89, %v112
    %v121 = vsel %vm105, %v91, %v113
    %v122 = vsel %vm106, %v93, %v114
    %v123 = vsel %vm107, %v95, %v115
    %v124 = vsel %vm108, %v97, %v116
    %v125 = vsel %vm109, %v99, %v117
    %v126 = vsel %vm110, %v101, %v118
    %v127 = vsel %vm111, %v103, %v119
    %v128 = vsel %vm104, %v112, %v89
    %v129 = vsel %vm105, %v113, %v91
    %v130 = vsel %vm106, %v114, %v93
    %v131 = vsel %vm107, %v115, %v95
    %v132 = vsel %vm108, %v116, %v97
    %v133 = vsel %vm109, %v117, %v99
    %v134 = vsel %vm110, %v118, %v101
    %v135 = vsel %vm111, %v119, %v103
    %v136 = vmul.f32 %v128, %v128
    %v137 = vmul.f32 %v129, %v129
    %v138 = vmul.f32 %v130, %v130
    %v139 = vmul.f32 %v131, %v131
    %v140 = vmul.f32 %v132, %v132
    %v141 = vmul.f32 %v133, %v133
    %v142 = vmul.f32 %v134, %v134
    %v143 = vmul.f32 %v135, %v135
    %v144 = vsel %vm104, 0.25, 0.75
    %v145 = vsel %vm105, 0.25, 0.75
    %v146 = vsel %vm106, 0.25, 0.75
    %v147 = vsel %vm107, 0.25, 0.75
    %v148 = vsel %vm108, 0.25, 0.75
    %v149 = vsel %vm109, 0.25, 0.75
    %v150 = vsel %vm110, 0.25, 0.75
    %v151 = vsel %vm111, 0.25, 0.75
    %v152 = vmul.f32 %v144, %v136
    %v153 = vmul.f32 %v145, %v137
    %v154 = vmul.f32 %v146, %v138
    %v155 = vmul.f32 %v147, %v139
    %v156 = vmul.f32 %v148, %v140
    %v157 = vmul.f32 %v149, %v141
    %v158 = vmul.f32 %v150, %v142
    %v159 = vmul.f32 %v151, %v143
    %v160 = vlog2.pop %v120
    %v161 = vmul.f32 %v160, 0.6931472
    %v162 = vlog2.pop %v121
    %v163 = vmul.f32 %v162, 0.6931472
    %v164 = vlog2.pop %v122
    %v165 = vmul.f32 %v164, 0.6931472
    %v166 = vlog2.pop %v123
    %v167 = vmul.f32 %v166, 0.6931472
    %v168 = vlog2.pop %v124
    %v169 = vmul.f32 %v168, 0.6931472
    %v170 = vlog2.pop %v125
    %v171 = vmul.f32 %v170, 0.6931472
    %v172 = vlog2.pop %v126
    %v173 = vmul.f32 %v172, 0.6931472
    %v174 = vlog2.pop %v127
    %v175 = vmul.f32 %v174, 0.6931472
    %v176 = vmax.f32 %v161, -100.0
    %v177 = vmax.f32 %v163, -100.0
    %v178 = vmax.f32 %v165, -100.0
    %v179 = vmax.f32 %v167, -100.0
    %v180 = vmax.f32 %v169, -100.0
    %v181 = vmax.f32 %v171, -100.0
    %v182 = vmax.f32 %v173, -100.0
    %v183 = vmax.f32 %v175, -100.0
    %v184 = vmul.f32 %v152, %v176
    %v185 = vmul.f32 %v153, %v177
    %v186 = vmul.f32 %v154, %v178
    %v187 = vmul.f32 %v155, %v179
    %v188 = vmul.f32 %v156, %v180
    %v189 = vmul.f32 %v157, %v181
    %v190 = vmul.f32 %v158, %v182
    %v191 = vmul.f32 %v159, %v183
    %v192 = vadd.f32 %v184, %v185
    %v193 = vadd.f32 %v192, %v186
    %v194 = vadd.f32 %v193, %v187
    %v195 = vadd.f32 %v194, %v188
    %v196 = vadd.f32 %v195, %v189
    %v197 = vadd.f32 %v196, %v190
    %v198 = vadd.f32 %v197, %v191
    %199 = vst [vmem:[#allocation7] sm:$0xff] %v198
    // Predicated region
    $region18: #{tpu_custom_call.1} parent=1 // pred_check
      _
    $region19: #{tpu_custom_call.1} parent=1 // pred_check_branch
      %201 = sbr.rel (0) target = $region21
    $region20: #{tpu_custom_call.1} parent=1 // pred_region
      %s203 = ssub.s32 128, 128
      %204 = vsyncadd [#allocation4], %s203
      %s206 = sshll.u32 [#allocation7], 4
      %s207 = int_to_ptr.vmem [resolvable:$true] %s206
      %209 = dma.vmem_to_hbm [thread:$0]  %s207, 128, %s2, [#allocation4]
    $region21: #{tpu_custom_call.1} parent=1 // pred_fallthru
      _
    // Predicated region
    $region22: #{tpu_custom_call.1} parent=1 // pred_check
      _
    $region23: #{tpu_custom_call.1} parent=1 // pred_check_branch
      %211 = sbr.rel (0) target = $region25
    $region24: #{tpu_custom_call.1} parent=1 // pred_region
      %212 = dma.done [#allocation4], 128
    $region25: #{tpu_custom_call.1} parent=1 // pred_fallthru
      _
    %213 = vsyncpa [#allocation3], 1
    %214 = vsyncpa [#allocation6], 1
    %215 = vsyncpa [#allocation4], 1

</llo_original>
